<compile_context>
chip_gen: v5e
topology: v5e:2x2
jax: 0.10.0
libtpu: 0.0.40
codegen_flags: <defaults>
</compile_context>

<pallas_src>
import math

import jax
import jax.numpy as jnp
from jax import lax
from jax.experimental import pallas as pl
from jax.experimental.pallas import tpu as pltpu


def _round_up(a, b):
    return (a + b - 1) // b * b


def _classifier_kernel(x_ref, w_ref, b_ref, mask_ref, out_ref):
    # x_ref:    (R, H)  row tile of flattened activations (native dtype)
    # w_ref:    (1, H)  linear weight (torch nn.Linear(H, 1) layout), x dtype
    # b_ref:    (1,)    bias, float32, SMEM
    # mask_ref: (1, R)  mask tile (int/float), lane-dense
    # out_ref:  (1, R)  sent_scores tile, float32, lane-dense
    #
    # TODO(synk): on v7x, confirm via pl.lower_as_mlir that this transposed-RHS
    # dot_general does not materialize an XLU transpose of the whole x tile; if
    # it does, switch to (R,H)·(H,1) plus a tiny (R,1)->(1,R) relayout.
    h = lax.dot_general(
        w_ref[...], x_ref[...],
        dimension_numbers=(((1,), (1,)), ((), ())),   # contract over H
        preferred_element_type=jnp.float32,
    )                                                 # (1, R), f32 accumulate
    h = h + b_ref[0]
    out_ref[...] = (jax.nn.sigmoid(h)
                    * mask_ref[...].astype(jnp.float32)).astype(out_ref.dtype)


def _vmem_capacity_bytes():
    try:
        return int(pltpu.get_tpu_info().vmem_capacity_bytes)
    except Exception:
        return 64 * 1024 * 1024   # conservative fallback (v7x per-TC VMEM)


def classifier_forward(x, weight, bias, mask_cls):
    """Pallas equivalent of Classifier.forward.

    x:        (B, S, H) float32 or bfloat16
    weight:   (1, H)    torch nn.Linear(hidden, 1) layout
    bias:     (1,)
    mask_cls: (B, S)    any dtype (cast to float in-kernel, as in torch .float())
    returns:  (B, S)    float32 sent_scores
    """
    B, S, H = x.shape
    N = B * S
    itemsize = jnp.dtype(x.dtype).itemsize
    h_pad = _round_up(H, 128)                    # lane padding of x tile in VMEM
    # NOTE: for very small H (<= 64) a row->lane folding in the wrapper would
    # give denser HBM rows; not done here to keep the kernel general.

    # ---- operands (metadata-only reshapes, no HBM copies) -------------------
    x_flat = x.reshape(N, H)
    mask_flat = mask_cls.reshape(1, N)
    if mask_flat.dtype == jnp.bool_:
        mask_flat = mask_flat.astype(jnp.int32)  # avoid i1 refs in Mosaic
    w_row = weight.reshape(1, H).astype(x.dtype)  # keep native dtype (bf16 ok)
    b = bias.reshape(1).astype(jnp.float32)       # scalar -> SMEM

    # ---- tile sizing (generation-aware) -------------------------------------
    vmem_cap = _vmem_capacity_bytes()
    # Double-buffered x should occupy ~half of VMEM:
    #   v5e/v6e (128 MiB) -> 32 MiB / buffer, v7x (64 MiB) -> 16 MiB / buffer.
    max_tile_bytes = vmem_cap // 4
    bytes_per_row = h_pad * itemsize
    rows_by_vmem = max(128, ((max_tile_bytes // bytes_per_row) // 128) * 128)
    ROW_CAP = 8192
    row_tile = min(ROW_CAP, rows_by_vmem, _round_up(N, 128))

    # Give the pipeline (and both v7x TensorCores) at least a few grid steps.
    MIN_STEPS = 4
    if pl.cdiv(N, row_tile) < MIN_STEPS:
        row_tile = max(128, _round_up(pl.cdiv(N, MIN_STEPS), 128))

    grid = (pl.cdiv(N, row_tile),)               # ragged tail handled by Pallas

    # ---- VMEM limit from the actual footprint (never all of physical VMEM) --
    x_tile_bytes = row_tile * h_pad * itemsize
    mask_itemsize = jnp.dtype(mask_flat.dtype).itemsize
    small_bytes = 2 * (8 * h_pad * itemsize            # weight block
                       + 8 * row_tile * mask_itemsize  # mask block
                       + 8 * row_tile * 4)             # output block
    vmem_limit = 2 * x_tile_bytes + small_bytes + (4 << 20)
    vmem_limit = max(32 << 20, min(vmem_limit, (vmem_cap * 3) // 4))

    out = pl.pallas_call(
        _classifier_kernel,
        out_shape=jax.ShapeDtypeStruct((1, N), jnp.float32),
        grid_spec=pltpu.PrefetchScalarGridSpec(
            num_scalar_prefetch=0,
            grid=grid,
            in_specs=[
                pl.BlockSpec((row_tile, H), lambda i: (i, 0)),         # x rows
                pl.BlockSpec((1, H), lambda i: (0, 0)),                # weight
                pl.BlockSpec(memory_space=pltpu.MemorySpace.SMEM),     # bias
                pl.BlockSpec((1, row_tile), lambda i: (0, i)),         # mask
            ],
            out_specs=pl.BlockSpec((1, row_tile), lambda i: (0, i)),   # scores
        ),
        compiler_params=pltpu.CompilerParams(
            dimension_semantics=("parallel",),
            vmem_limit_bytes=int(vmem_limit),
        ),
    )(x_flat, w_row, b, mask_flat)

    return out[0].reshape(B, S)


def classifier_reference(x, weight, bias, mask_cls):
    """Pure-JAX reference matching the torch forward."""
    h = jnp.einsum("bsh,oh->bso", x.astype(jnp.float32),
                   weight.astype(jnp.float32)) + bias          # (B, S, 1)
    h = h[..., 0]                                              # squeeze(-1)
    return jax.nn.sigmoid(h) * mask_cls.astype(jnp.float32)


if __name__ == "__main__":
    B, S, H = 2, 8, 32  # small shapes: batch=2, seq=8, hidden=32

    key = jax.random.PRNGKey(0)
    kx, kw, kb, km = jax.random.split(key, 4)

    x = jax.random.normal(kx, (B, S, H), dtype=jnp.float32)

    # Deterministic nn.Linear(hidden_size, 1)-style init: U(-1/sqrt(H), 1/sqrt(H))
    bound = 1.0 / math.sqrt(H)
    weight = jax.random.uniform(kw, (1, H), minval=-bound, maxval=bound,
                                dtype=jnp.float32)
    bias = jax.random.uniform(kb, (1,), minval=-bound, maxval=bound,
                              dtype=jnp.float32)

    # Binary mask (like mask_cls in the torch code)
    mask_cls = (jax.random.uniform(km, (B, S)) > 0.3).astype(jnp.int32)

    # float32 activations
    out = classifier_forward(x, weight, bias, mask_cls)
    out = jax.block_until_ready(out)
    ref = classifier_reference(x, weight, bias, mask_cls)
    assert out.shape == (B, S)
    assert jnp.allclose(out, ref, atol=1e-5, rtol=1e-5), "f32 mismatch vs reference"

    # native bfloat16 activations (no wrapper upcast; f32 MXU accumulate)
    xb = x.astype(jnp.bfloat16)
    out_bf16 = classifier_forward(xb, weight, bias, mask_cls)
    out_bf16 = jax.block_until_ready(out_bf16)
    ref_bf16 = classifier_reference(xb, weight.astype(jnp.bfloat16), bias, mask_cls)
    assert out_bf16.shape == (B, S)
    assert jnp.allclose(out_bf16, ref_bf16, atol=1e-3, rtol=1e-3), "bf16 mismatch vs reference"

    print("KERNEL_OK")
</pallas_src>

<mosaic_0001>
module attributes {stable_mosaic.version = 11 : i64} {
  func.func @_classifier_kernel(%arg0: i32, %arg1: memref<128x32xf32, #tpu.memory_space<vmem>>, %arg2: memref<1x32xf32, #tpu.memory_space<vmem>>, %arg3: memref<1xf32, #tpu.memory_space<smem>>, %arg4: memref<1x128xi32, #tpu.memory_space<vmem>>, %arg5: memref<1x128xf32, #tpu.memory_space<vmem>>) attributes {dimension_semantics = [#tpu.dimension_semantics<parallel>], iteration_bounds = array<i64: 1>, scalar_prefetch = 0 : i64, scratch_operands = 0 : i64, tpu.core_type = #tpu.core_type<tc>, window_params = [{transform_indices = @transform_0, window_bounds = array<i64: 128, 32>}, {pipeline_mode = #tpu.pipeline_mode<synchronous>, transform_indices = @transform_1, window_bounds = array<i64: 1, 32>}, {transform_indices = @transform_2, window_bounds = array<i64: 1>}, {transform_indices = @transform_3, window_bounds = array<i64: 1, 128>}, {transform_indices = @transform_4, window_bounds = array<i64: 1, 128>}]} {
    %c0 = arith.constant 0 : index
    %c0_0 = arith.constant 0 : index
    %0 = vector.load %arg2[%c0, %c0_0] : memref<1x32xf32, #tpu.memory_space<vmem>>, vector<1x32xf32>
    %c0_1 = arith.constant 0 : index
    %c0_2 = arith.constant 0 : index
    %1 = vector.load %arg1[%c0_1, %c0_2] : memref<128x32xf32, #tpu.memory_space<vmem>>, vector<128x32xf32>
    %cst = arith.constant dense<0.000000e+00> : vector<1x128xf32>
    %2 = tpu.matmul %0, %1, %cst {dimension_numbers = #tpu.dot_dimension_numbers<[1], [1], [0], [0], [0, 0, 1, 0], [], []>} : vector<1x32xf32>, vector<128x32xf32>, vector<1x128xf32> -> vector<1x128xf32>
    %c0_3 = arith.constant 0 : index
    %3 = memref.load %arg3[%c0_3] : memref<1xf32, #tpu.memory_space<smem>>
    %4 = vector.broadcast %3 : f32 to vector<1x128xf32>
    %5 = arith.addf %2, %4 : vector<1x128xf32>
    %6 = arith.negf %5 : vector<1x128xf32>
    %7 = math.exp %6 : vector<1x128xf32>
    %cst_4 = arith.constant 1.000000e+00 : f32
    %8 = vector.broadcast %cst_4 : f32 to vector<1x128xf32>
    %9 = arith.addf %8, %7 : vector<1x128xf32>
    %10 = arith.divf %8, %9 : vector<1x128xf32>
    %c0_5 = arith.constant 0 : index
    %c0_6 = arith.constant 0 : index
    %11 = vector.load %arg4[%c0_5, %c0_6] : memref<1x128xi32, #tpu.memory_space<vmem>>, vector<1x128xi32>
    %12 = arith.sitofp %11 : vector<1x128xi32> to vector<1x128xf32>
    %13 = arith.mulf %10, %12 : vector<1x128xf32>
    %c0_7 = arith.constant 0 : index
    %c0_8 = arith.constant 0 : index
    %14 = vector.load %arg5[%c0_7, %c0_8] : memref<1x128xf32, #tpu.memory_space<vmem>>, vector<1x128xf32>
    tpu.vector_store %arg5[%c0_7, %c0_8], %13 {strides = array<i32>} : memref<1x128xf32, #tpu.memory_space<vmem>>, vector<1x128xf32>,
    return
  }
  func.func @transform_0(%arg0: i32) -> (i32, i32) {
    %c0_i32 = arith.constant 0 : i32
    %c0_i32_0 = arith.constant 0 : i32
    return %arg0, %c0_i32 : i32, i32
  }
  func.func @transform_1(%arg0: i32) -> (i32, i32) {
    %c0_i32 = arith.constant 0 : i32
    %c0_i32_0 = arith.constant 0 : i32
    %c0_i32_1 = arith.constant 0 : i32
    return %c0_i32, %c0_i32_0 : i32, i32
  }
  func.func @transform_2(%arg0: i32) -> i32 {
    %c0_i32 = arith.constant 0 : i32
    %c0_i32_0 = arith.constant 0 : i32
    return %c0_i32 : i32
  }
  func.func @transform_3(%arg0: i32) -> (i32, i32) {
    %c0_i32 = arith.constant 0 : i32
    %c0_i32_0 = arith.constant 0 : i32
    return %c0_i32, %arg0 : i32, i32
  }
  func.func @transform_4(%arg0: i32) -> (i32, i32) {
    %c0_i32 = arith.constant 0 : i32
    %c0_i32_0 = arith.constant 0 : i32
    return %c0_i32, %arg0 : i32, i32
  }
}

</mosaic_0001>

<llo_original>
// kernel: tpu_custom_call.1
$region0: #{tpu_custom_call.1}
  #allocation0 [shape = 'u32[]', space=smem, size = 0x4, offset = 0x4, fixed_abs, tag = 'smem constant byte address 0x4 - core index']
  #allocation1 [shape = 'u32[72,128]{1,0:T(1,128)}', space=vmem, size = 0x9000, scoped, tag = 'internal scratch']
  #allocation2 [shape = 'f32[1]{0:T(128)S(6)}', space=smem, size = 0x200, scoped, tag = 'scoped memory for tpu_custom_call.1']
  %s0 = inlined_call_operand.hbm [shape: f32[16,32], index: 0, kind: input, shape index: {}]
  %s1 = inlined_call_operand.vmem [shape: f32[1,32], index: 1, kind: input, shape index: {}]
  %s2 = inlined_call_operand.<no memory space> [shape: f32[1], index: 2, kind: input, shape index: {}]
  %s3 = inlined_call_operand.vmem [shape: s32[1,16], index: 3, kind: input, shape index: {}]
  %s4 = inlined_call_operand.hbm [shape: f32[1,16], index: 4, kind: output, shape index: {}]
  %s5 = sld [smem:[#allocation0]]
  $region30: #{tpu_custom_call.1} parent=0
    _
  %s7 = ssub.s32 1, %s5
  %s8 = scalar_select 0, %s7, %s5
  %9 = sst [smem:[#allocation2]] %s2
  $region1: #{tpu_custom_call.1} parent=0
    #allocation3 [shape = 'u8[65536]{0}', space=vmem, size = 0x10000, scoped, tag = 'input window, operand 0, single buffered']
    #allocation4 [shape = 's32[1]{0}', space=sflag, size = 0x4, scoped, tag = 'scoped memory for tpu_custom_call.1']
    #allocation5 [shape = 's32[1]{0}', space=sflag, size = 0x4, scoped, tag = 'scoped memory for tpu_custom_call.1']
    #allocation6 [shape = 'u8[512]{0}', space=vmem, size = 0x400, scoped, tag = 'output window, operand 0, single buffered']
    %10 = vsyncpa [#allocation4], 0
    %11 = vsyncpa [#allocation5], 0
    // Predicated region
    $region2: #{tpu_custom_call.1} parent=1 // pred_check
      _
    $region3: #{tpu_custom_call.1} parent=1 // pred_check_branch
      %13 = sbr.rel (0) target = $region5
    $region4: #{tpu_custom_call.1} parent=1 // pred_region
      %15 = vsyncadd [#allocation4], 1792
      %s16 = sshll.u32 %s0, 4
      %s17 = int_to_ptr.hbm [resolvable:$true] %s16
      %s18 = sshll.u32 [#allocation3], 4
      %s19 = int_to_ptr.vmem [resolvable:$true] %s18
      %24 = dma.hbm_to_vmem [thread:$0]  %s17, 256, %s19, [#allocation4], 128, 128, 8
    $region5: #{tpu_custom_call.1} parent=1 // pred_fallthru
      _
    // Predicated region
    $region6: #{tpu_custom_call.1} parent=1 // pred_check
      _
    $region7: #{tpu_custom_call.1} parent=1 // pred_check_branch
      %26 = sbr.rel (0) target = $region9
    $region8: #{tpu_custom_call.1} parent=1 // pred_region
      _
    $region9: #{tpu_custom_call.1} parent=1 // pred_fallthru
      _
    // Predicated region
    $region10: #{tpu_custom_call.1} parent=1 // pred_check
      _
    $region11: #{tpu_custom_call.1} parent=1 // pred_check_branch
      %28 = sbr.rel (0) target = $region13
    $region12: #{tpu_custom_call.1} parent=1 // pred_region
      _
    $region13: #{tpu_custom_call.1} parent=1 // pred_fallthru
      _
    // Predicated region
    $region14: #{tpu_custom_call.1} parent=1 // pred_check
      _
    $region15: #{tpu_custom_call.1} parent=1 // pred_check_branch
      %30 = sbr.rel (0) target = $region17
    $region16: #{tpu_custom_call.1} parent=1 // pred_region
      _
    $region17: #{tpu_custom_call.1} parent=1 // pred_fallthru
      _
    // Predicated region
    $region18: #{tpu_custom_call.1} parent=1 // pred_check
      _
    $region19: #{tpu_custom_call.1} parent=1 // pred_check_branch
      %32 = sbr.rel (0) target = $region21
    $region20: #{tpu_custom_call.1} parent=1 // pred_region
      %34 = dma.done [#allocation4], 2048
    $region21: #{tpu_custom_call.1} parent=1 // pred_fallthru
      _
    %v35 = vld [vmem:[%s1] sm:$0x1]
    %v36 = vld [vmem:[#allocation3] sm:$0xff]
    %v37 = vld [vmem:[#allocation3 + $0x8] sm:$0xff]
    %v38 = vld [vmem:[#allocation3 + $0x10] sm:$0xff]
    %v39 = vld [vmem:[#allocation3 + $0x18] sm:$0xff]
    %v40 = vld [vmem:[#allocation3 + $0x20] sm:$0xff]
    %v41 = vld [vmem:[#allocation3 + $0x28] sm:$0xff]
    %v42 = vld [vmem:[#allocation3 + $0x30] sm:$0xff]
    %v43 = vld [vmem:[#allocation3 + $0x38] sm:$0xff]
    %v44 = vld [vmem:[#allocation3 + $0x40] sm:$0xff]
    %v45 = vld [vmem:[#allocation3 + $0x48] sm:$0xff]
    %v46 = vld [vmem:[#allocation3 + $0x50] sm:$0xff]
    %v47 = vld [vmem:[#allocation3 + $0x58] sm:$0xff]
    %v48 = vld [vmem:[#allocation3 + $0x60] sm:$0xff]
    %v49 = vld [vmem:[#allocation3 + $0x68] sm:$0xff]
    %v50 = vld [vmem:[#allocation3 + $0x70] sm:$0xff]
    %v51 = vld [vmem:[#allocation3 + $0x78] sm:$0xff]
    %s52 = sld [smem:[#allocation2]]
    %v53 = vstv %s52
    %vm54 = vcmask 261120
    %v56 = vsel %vm54, %v35, 0
    %v59 = vsel %vm54, %v36, 0
    %v62 = vsel %vm54, %v37, 0
    %v65 = vsel %vm54, %v38, 0
    %v68 = vsel %vm54, %v39, 0
    %v71 = vsel %vm54, %v40, 0
    %v74 = vsel %vm54, %v41, 0
    %v77 = vsel %vm54, %v42, 0
    %v80 = vsel %vm54, %v43, 0
    %v83 = vsel %vm54, %v44, 0
    %v86 = vsel %vm54, %v45, 0
    %v89 = vsel %vm54, %v46, 0
    %v92 = vsel %vm54, %v47, 0
    %v95 = vsel %vm54, %v48, 0
    %v98 = vsel %vm54, %v49, 0
    %v101 = vsel %vm54, %v50, 0
    %v104 = vsel %vm54, %v51, 0
    %106 = vmatpush.xpose.msra.mxu0 %v104
    %107 = vmatpush.xpose.msra.mxu0 %v101
    %108 = vmatpush.xpose.msra.mxu0 %v98
    %109 = vmatpush.xpose.msra.mxu0 %v95
    %110 = vmatpush.xpose.msra.mxu0 %v92
    %111 = vmatpush.xpose.msra.mxu0 %v89
    %112 = vmatpush.xpose.msra.mxu0 %v86
    %113 = vmatpush.xpose.msra.mxu0 %v83
    %114 = vmatpush.xpose.msra.mxu0 %v80
    %115 = vmatpush.xpose.msra.mxu0 %v77
    %116 = vmatpush.xpose.msra.mxu0 %v74
    %117 = vmatpush.xpose.msra.mxu0 %v71
    %118 = vmatpush.xpose.msra.mxu0 %v68
    %119 = vmatpush.xpose.msra.mxu0 %v65
    %120 = vmatpush.xpose.msra.mxu0 %v62
    %121 = vmatpush.xpose.msra.mxu0 %v59
    %122 = vmatmul.f32.gmra.mxu0 %v56
    %v123 = vpop.f32.mrf.mxu0
    %v124 = vadd.f32 %v53, %v123
    %125 = vdwg.mxu0
    %v126 = vxor.u32 %v124, 2147483648
    %v127 = vmul.f32 %v126, 1.442695
    %v128 = vpow.pop %v127
    %v129 = vadd.f32 %v128, 1.0
    %v130 = vrcp.pop %v129
    %v131 = vmul.f32 %v129, %v130
    %v132 = vsub.f32 1.0, %v131
    %v133 = vmul.f32 %v130, %v132
    %v134 = vadd.f32 %v130, %v133
    %vm135 = vweird.f32 %v129
    %vm136 = vweird.f32 %v130
    %vm137 = vmor %vm135, %vm136
    %v138 = vsel %vm137, %v130, %v134
    %v139 = vand.u32 2147483647, %v129
    %vm140 = vcmp.eq.f32.partialorder %v139, 8.507059e+37
    %v141 = vand.u32 %v129, 2147483648
    %v142 = vor.u32 1.1754944e-38, %v141
    %v143 = vsel %vm140, %v142, %v138
    %v144 = vmul.f32 1.0, %v143
    %v145 = vld [vmem:[%s3] sm:$0x1]
    %v146 = vcvt.s32.f32 %v145
    %v147 = vmul.f32 %v144, %v146
    %148 = vst [vmem:[#allocation6] sm:$0x1] %v147
    // Predicated region
    $region22: #{tpu_custom_call.1} parent=1 // pred_check
      _
    $region23: #{tpu_custom_call.1} parent=1 // pred_check_branch
      %150 = sbr.rel (0) target = $region25
    $region24: #{tpu_custom_call.1} parent=1 // pred_region
      %152 = vsyncadd [#allocation5], 0
      %s154 = sshll.u32 [#allocation6], 4
      %s155 = int_to_ptr.vmem [resolvable:$true] %s154
      %s156 = sshll.u32 %s4, 4
      %s157 = int_to_ptr.hbm [resolvable:$true] %s156
      %159 = dma.vmem_to_hbm [thread:$0]  %s155, 16, %s157, [#allocation5]
    $region25: #{tpu_custom_call.1} parent=1 // pred_fallthru
      _
    // Predicated region
    $region26: #{tpu_custom_call.1} parent=1 // pred_check
      _
    $region27: #{tpu_custom_call.1} parent=1 // pred_check_branch
      %161 = sbr.rel (0) target = $region29
    $region28: #{tpu_custom_call.1} parent=1 // pred_region
      %163 = dma.done [#allocation5], 16
    $region29: #{tpu_custom_call.1} parent=1 // pred_fallthru
      _
    %164 = vsyncpa [#allocation4], 1
    %165 = vsyncpa [#allocation5], 1

</llo_original>
